<compile_context>
chip_gen: v7x
topology: tpu7x:2x2x1
jax: 0.10.0
libtpu: 0.0.40
codegen_flags: <defaults>
</compile_context>

<pallas_src>
import functools

import jax
import jax.numpy as jnp
from jax import lax
from jax.experimental import pallas as pl
from jax.experimental.pallas import tpu as pltpu

EPS = 1e-5
_VMEM_LIMIT = 32 * 1024 * 1024   # safe scoped-VMEM budget on v5e / v6e / v7x


def _pick_tile(dim, target, align):
    """Largest multiple of `align` that divides `dim` and is <= target, else the full dim."""
    if dim <= target or dim % align != 0:
        return dim
    t = (target // align) * align
    while t >= align:
        if dim % t == 0:
            return t
        t -= align
    return dim


# ---------------------------------------------------------------------------
# Cumulative LayerNorm (cLN 1D / 2D, also used for cIN 2D)
# Carry-based scan over T tiles: grid = (B, T/Tt), scan axis "arbitrary".
# ---------------------------------------------------------------------------

def _cln1d_kernel(x_ref, g_ref, b_ref, o_ref, cs_ref, cp_ref):
    t = pl.program_id(1)

    @pl.when(t == 0)
    def _():
        cs_ref[...] = jnp.zeros_like(cs_ref)
        cp_ref[...] = jnp.zeros_like(cp_ref)

    x = x_ref[0].astype(jnp.float32)                          # (C, Tt)
    C, Tt = x.shape
    step_sum = jnp.sum(x, axis=0, keepdims=True)              # (1, Tt)
    step_pow = jnp.sum(x * x, axis=0, keepdims=True)          # (1, Tt)

    # Intra-tile prefix sum via a small (Tt, Tt) triangle on the MXU.
    row = lax.broadcasted_iota(jnp.int32, (Tt, Tt), 0)
    col = lax.broadcasted_iota(jnp.int32, (Tt, Tt), 1)
    triu = (row <= col).astype(jnp.float32)                   # cum[c] = sum_{r<=c}
    cum_sum = jnp.dot(step_sum, triu, preferred_element_type=jnp.float32) + cs_ref[...]
    cum_pow = jnp.dot(step_pow, triu, preferred_element_type=jnp.float32) + cp_ref[...]

    # Update the carry with this tile's totals (used by the next T tile).
    cs_ref[...] += jnp.sum(step_sum, axis=1, keepdims=True)
    cp_ref[...] += jnp.sum(step_pow, axis=1, keepdims=True)

    pos = lax.broadcasted_iota(jnp.int32, (1, Tt), 1) + t * Tt + 1
    cnt = pos.astype(jnp.float32) * float(C)
    cum_mean = cum_sum / cnt
    cum_var = (cum_pow - 2.0 * cum_mean * cum_sum) / cnt + cum_mean * cum_mean
    inv_std = lax.rsqrt(jnp.maximum(cum_var, 0.0) + EPS)      # clamp guards f32 cancellation
    xn = (x - cum_mean) * inv_std
    o_ref[0] = (xn * g_ref[...] + b_ref[...]).astype(o_ref.dtype)


def _cln2d_kernel(x_ref, g_ref, b_ref, o_ref, cs_ref, cp_ref):
    t = pl.program_id(1)

    @pl.when(t == 0)
    def _():
        cs_ref[...] = jnp.zeros_like(cs_ref)
        cp_ref[...] = jnp.zeros_like(cp_ref)

    x = x_ref[0].astype(jnp.float32)                          # (C, Tt, F)
    C, Tt, F = x.shape
    # Pool over channels and frequency; keep T on sublanes -> (Tt, 1).
    step_sum = jnp.sum(jnp.sum(x, axis=2, keepdims=True), axis=0)       # (Tt, 1)
    step_pow = jnp.sum(jnp.sum(x * x, axis=2, keepdims=True), axis=0)   # (Tt, 1)

    row = lax.broadcasted_iota(jnp.int32, (Tt, Tt), 0)
    col = lax.broadcasted_iota(jnp.int32, (Tt, Tt), 1)
    tril = (col <= row).astype(jnp.float32)                   # cum[r] = sum_{c<=r}
    cum_sum = jnp.dot(tril, step_sum, preferred_element_type=jnp.float32) + cs_ref[...]
    cum_pow = jnp.dot(tril, step_pow, preferred_element_type=jnp.float32) + cp_ref[...]

    cs_ref[...] += jnp.sum(step_sum, axis=0, keepdims=True)
    cp_ref[...] += jnp.sum(step_pow, axis=0, keepdims=True)

    pos = lax.broadcasted_iota(jnp.int32, (Tt, 1), 0) + t * Tt + 1
    cnt = pos.astype(jnp.float32) * float(C * F)
    cum_mean = cum_sum / cnt                                  # (Tt, 1)
    cum_var = (cum_pow - 2.0 * cum_mean * cum_sum) / cnt + cum_mean * cum_mean
    inv_std = lax.rsqrt(jnp.maximum(cum_var, 0.0) + EPS)      # (Tt, 1)
    xn = (x - cum_mean[None, :, :]) * inv_std[None, :, :]
    o_ref[0] = (xn * g_ref[...] + b_ref[...]).astype(o_ref.dtype)


def _call_cln1d(x, gain, bias):
    B, C, T = x.shape
    Tt = _pick_tile(T, 512, 128)
    return pl.pallas_call(
        _cln1d_kernel,
        out_shape=jax.ShapeDtypeStruct(x.shape, x.dtype),
        grid=(B, T // Tt),
        in_specs=[
            pl.BlockSpec((1, C, Tt), lambda b, t: (b, 0, t)),
            pl.BlockSpec((C, 1), lambda b, t: (0, 0)),
            pl.BlockSpec((C, 1), lambda b, t: (0, 0)),
        ],
        out_specs=pl.BlockSpec((1, C, Tt), lambda b, t: (b, 0, t)),
        scratch_shapes=[pltpu.VMEM((1, 1), jnp.float32),
                        pltpu.VMEM((1, 1), jnp.float32)],
        compiler_params=pltpu.CompilerParams(
            dimension_semantics=("parallel", "arbitrary"),
            vmem_limit_bytes=_VMEM_LIMIT),
    )(x, gain, bias)


def _call_cln2d(x, gain, bias):
    B, C, T, F = x.shape
    Tt = _pick_tile(T, 32, 8)
    return pl.pallas_call(
        _cln2d_kernel,
        out_shape=jax.ShapeDtypeStruct(x.shape, x.dtype),
        grid=(B, T // Tt),
        in_specs=[
            pl.BlockSpec((1, C, Tt, F), lambda b, t: (b, 0, t, 0)),
            pl.BlockSpec((C, 1, 1), lambda b, t: (0, 0, 0)),
            pl.BlockSpec((C, 1, 1), lambda b, t: (0, 0, 0)),
        ],
        out_specs=pl.BlockSpec((1, C, Tt, F), lambda b, t: (b, 0, t, 0)),
        scratch_shapes=[pltpu.VMEM((1, 1), jnp.float32),
                        pltpu.VMEM((1, 1), jnp.float32)],
        compiler_params=pltpu.CompilerParams(
            dimension_semantics=("parallel", "arbitrary"),
            vmem_limit_bytes=_VMEM_LIMIT),
    )(x, gain, bias)


# ---------------------------------------------------------------------------
# Instant LayerNorm (iLN 1D / 2D) -- per-timestep stats, fully parallel T tiles
# ---------------------------------------------------------------------------

def _iln1d_kernel(x_ref, g_ref, b_ref, o_ref):
    x = x_ref[0].astype(jnp.float32)                          # (C, Tt)
    C = x.shape[0]
    mean = jnp.mean(x, axis=0, keepdims=True)                 # (1, Tt)
    d = x - mean
    var = jnp.sum(d * d, axis=0, keepdims=True) * (1.0 / (C - 1))   # torch.var (unbiased)
    xn = d * lax.rsqrt(var + EPS)
    o_ref[0] = (xn * g_ref[...] + b_ref[...]).astype(o_ref.dtype)


def _iln2d_kernel(x_ref, g_ref, b_ref, o_ref):
    # Faithfully reproduces the reference's (torch.std(...) + eps).sqrt() quirk.
    x = x_ref[0].astype(jnp.float32)                          # (C, Tt, F)
    C, Tt, F = x.shape
    n = C * F
    m = jnp.sum(jnp.sum(x, axis=2, keepdims=True), axis=0, keepdims=True) * (1.0 / n)
    d = x - m
    ss = jnp.sum(jnp.sum(d * d, axis=2, keepdims=True), axis=0, keepdims=True)
    std_unbiased = jnp.sqrt(ss * (1.0 / (n - 1)))             # torch.std (unbiased)
    xn = d * lax.rsqrt(std_unbiased + EPS)                    # == d / sqrt(std + eps)
    o_ref[0] = (xn * g_ref[...] + b_ref[...]).astype(o_ref.dtype)


def _call_iln1d(x, gain, bias):
    B, C, T = x.shape
    Tt = _pick_tile(T, 512, 128)
    return pl.pallas_call(
        _iln1d_kernel,
        out_shape=jax.ShapeDtypeStruct(x.shape, x.dtype),
        grid=(B, T // Tt),
        in_specs=[
            pl.BlockSpec((1, C, Tt), lambda b, t: (b, 0, t)),
            pl.BlockSpec((C, 1), lambda b, t: (0, 0)),
            pl.BlockSpec((C, 1), lambda b, t: (0, 0)),
        ],
        out_specs=pl.BlockSpec((1, C, Tt), lambda b, t: (b, 0, t)),
        compiler_params=pltpu.CompilerParams(
            dimension_semantics=("parallel", "parallel"),
            vmem_limit_bytes=_VMEM_LIMIT),
    )(x, gain, bias)


def _call_iln2d(x, gain, bias):
    B, C, T, F = x.shape
    Tt = _pick_tile(T, 32, 8)
    return pl.pallas_call(
        _iln2d_kernel,
        out_shape=jax.ShapeDtypeStruct(x.shape, x.dtype),
        grid=(B, T // Tt),
        in_specs=[
            pl.BlockSpec((1, C, Tt, F), lambda b, t: (b, 0, t, 0)),
            pl.BlockSpec((C, 1, 1), lambda b, t: (0, 0, 0)),
            pl.BlockSpec((C, 1, 1), lambda b, t: (0, 0, 0)),
        ],
        out_specs=pl.BlockSpec((1, C, Tt, F), lambda b, t: (b, 0, t, 0)),
        compiler_params=pltpu.CompilerParams(
            dimension_semantics=("parallel", "parallel"),
            vmem_limit_bytes=_VMEM_LIMIT),
    )(x, gain, bias)


# ---------------------------------------------------------------------------
# Instance Norm (IN 1D / 2D) -- per-(b, c) biased stats; tiled over C, lane-dense
# (2D input is collapsed to (B, C, T*F) at the wrapper -- identical statistics)
# ---------------------------------------------------------------------------

def _in_kernel(x_ref, g_ref, b_ref, o_ref):
    x = x_ref[0].astype(jnp.float32)                          # (Cc, L)
    L = x.shape[1]
    mean = jnp.sum(x, axis=1, keepdims=True) * (1.0 / L)
    d = x - mean
    var = jnp.sum(d * d, axis=1, keepdims=True) * (1.0 / L)   # biased (training mode)
    xn = d * lax.rsqrt(var + EPS)
    o_ref[0] = (xn * g_ref[...] + b_ref[...]).astype(o_ref.dtype)


def _call_in(x, gain, bias):
    B, C, L = x.shape
    Cc = _pick_tile(C, 32, 8)
    return pl.pallas_call(
        _in_kernel,
        out_shape=jax.ShapeDtypeStruct(x.shape, x.dtype),
        grid=(B, C // Cc),
        in_specs=[
            pl.BlockSpec((1, Cc, L), lambda b, c: (b, c, 0)),
            pl.BlockSpec((Cc, 1), lambda b, c: (c, 0)),
            pl.BlockSpec((Cc, 1), lambda b, c: (c, 0)),
        ],
        out_specs=pl.BlockSpec((1, Cc, L), lambda b, c: (b, c, 0)),
        compiler_params=pltpu.CompilerParams(
            dimension_semantics=("parallel", "parallel"),
            vmem_limit_bytes=_VMEM_LIMIT),
    )(x, gain, bias)


# ---------------------------------------------------------------------------
# Batch Norm (training-mode batch statistics), two tiled passes
# (2D input is collapsed to (B, C, T*F) at the wrapper -- identical statistics)
# ---------------------------------------------------------------------------

def _bn_stats_kernel(x_ref, sum_ref, sq_ref):
    first = jnp.logical_and(pl.program_id(0) == 0, pl.program_id(1) == 0)

    @pl.when(first)
    def _():
        sum_ref[...] = jnp.zeros_like(sum_ref)
        sq_ref[...] = jnp.zeros_like(sq_ref)

    x = x_ref[0].astype(jnp.float32)                          # (C, Lt)
    sum_ref[...] += jnp.sum(x, axis=1, keepdims=True)         # (C, 1)
    sq_ref[...] += jnp.sum(x * x, axis=1, keepdims=True)      # (C, 1)


def _bn_norm_kernel(x_ref, s_ref, q_ref, g_ref, b_ref, o_ref, *, inv_n):
    x = x_ref[0].astype(jnp.float32)                          # (C, Lt)
    mean = s_ref[...] * inv_n                                 # (C, 1)
    var = jnp.maximum(q_ref[...] * inv_n - mean * mean, 0.0)  # biased batch var
    scale = lax.rsqrt(var + EPS) * g_ref[...]
    o_ref[0] = ((x - mean) * scale + b_ref[...]).astype(o_ref.dtype)


def _call_bn(x, gain, bias):
    # TODO(synk): only training-mode batch statistics; running-stat buffers are not tracked.
    B, C, L = x.shape
    Lt = _pick_tile(L, 2048, 128)
    nL = L // Lt
    inv_n = 1.0 / float(B * L)

    sums, sqs = pl.pallas_call(
        _bn_stats_kernel,
        out_shape=(jax.ShapeDtypeStruct((C, 1), jnp.float32),
                   jax.ShapeDtypeStruct((C, 1), jnp.float32)),
        grid=(B, nL),
        in_specs=[pl.BlockSpec((1, C, Lt), lambda b, t: (b, 0, t))],
        out_specs=[pl.BlockSpec((C, 1), lambda b, t: (0, 0)),
                   pl.BlockSpec((C, 1), lambda b, t: (0, 0))],
        compiler_params=pltpu.CompilerParams(
            dimension_semantics=("arbitrary", "arbitrary"),
            vmem_limit_bytes=_VMEM_LIMIT),
    )(x)

    kern = functools.partial(_bn_norm_kernel, inv_n=inv_n)
    return pl.pallas_call(
        kern,
        out_shape=jax.ShapeDtypeStruct(x.shape, x.dtype),
        grid=(B, nL),
        in_specs=[
            pl.BlockSpec((1, C, Lt), lambda b, t: (b, 0, t)),
            pl.BlockSpec((C, 1), lambda b, t: (0, 0)),
            pl.BlockSpec((C, 1), lambda b, t: (0, 0)),
            pl.BlockSpec((C, 1), lambda b, t: (0, 0)),
            pl.BlockSpec((C, 1), lambda b, t: (0, 0)),
        ],
        out_specs=pl.BlockSpec((1, C, Lt), lambda b, t: (b, 0, t)),
        compiler_params=pltpu.CompilerParams(
            dimension_semantics=("parallel", "parallel"),
            vmem_limit_bytes=_VMEM_LIMIT),
    )(x, sums, sqs, gain, bias)


# ---------------------------------------------------------------------------
# NormSwitch (JAX/Pallas port of the PyTorch module)
# ---------------------------------------------------------------------------

class NormSwitch:
    def __init__(self, norm_type: str, format: str, num_features: int, affine: bool = True):
        self.norm_type = norm_type
        self.format = format
        self.num_features = num_features
        self.affine = affine
        C = num_features
        # Deterministic init identical to the torch module: gain = ones, bias = zeros.
        self.gain = jnp.ones((C, 1), jnp.float32)
        self.bias = jnp.zeros((C, 1), jnp.float32)

    def __call__(self, x):
        nt, fmt = self.norm_type, self.format
        C = self.num_features
        g2, b2 = self.gain, self.bias
        g3, b3 = g2.reshape(C, 1, 1), b2.reshape(C, 1, 1)

        if nt == "BN":
            if fmt == "1D":
                return _call_bn(x, g2, b2)
            B, Cx, T, F = x.shape
            y = _call_bn(x.reshape(B, Cx, T * F), g2, b2)
            return y.reshape(B, Cx, T, F)
        if nt == "IN":
            if fmt == "1D":
                return _call_in(x, g2, b2)
            B, Cx, T, F = x.shape
            y = _call_in(x.reshape(B, Cx, T * F), g2, b2)
            return y.reshape(B, Cx, T, F)
        if nt == "cLN":
            return _call_cln1d(x, g2, b2) if fmt == "1D" else _call_cln2d(x, g3, b3)
        if nt == "cIN":
            if fmt != "2D":
                # original module leaves self.norm undefined for cIN + 1D
                raise ValueError("cIN is only defined for the 2D format")
            return _call_cln2d(x, g3, b3)
        if nt == "iLN":
            return _call_iln1d(x, g2, b2) if fmt == "1D" else _call_iln2d(x, g3, b3)
        raise ValueError(f"unknown norm_type {nt}")


# ---------------------------------------------------------------------------
# Demo / smoke test
# ---------------------------------------------------------------------------

if __name__ == "__main__":
    key = jax.random.PRNGKey(0)
    k1, k2 = jax.random.split(key)
    B, C, T, F = 2, 4, 16, 16
    x1d = jax.random.normal(k1, (B, C, T), jnp.float32)
    x2d = jax.random.normal(k2, (B, C, T, F), jnp.float32)

    configs = [
        ("BN", "1D", x1d), ("BN", "2D", x2d),
        ("IN", "1D", x1d), ("IN", "2D", x2d),
        ("cLN", "1D", x1d), ("cLN", "2D", x2d),
        ("cIN", "2D", x2d),
        ("iLN", "1D", x1d), ("iLN", "2D", x2d),
    ]
    for norm_type, fmt, x in configs:
        mod = NormSwitch(norm_type, fmt, C, affine=True)
        y = mod(x)
        jax.block_until_ready(y)
        assert y.shape == x.shape and y.dtype == x.dtype
        assert bool(jnp.all(jnp.isfinite(y)))

    print("KERNEL_OK")
</pallas_src>

<mosaic_0001>
module attributes {stable_mosaic.version = 11 : i64} {
  func.func @_bn_stats_kernel(%arg0: i32, %arg1: i32, %arg2: memref<1x4x16xf32, #tpu.memory_space<vmem>>, %arg3: memref<4x1xf32, #tpu.memory_space<vmem>>, %arg4: memref<4x1xf32, #tpu.memory_space<vmem>>) attributes {dimension_semantics = [#tpu.dimension_semantics<arbitrary>, #tpu.dimension_semantics<arbitrary>], iteration_bounds = array<i64: 2, 1>, scalar_prefetch = 0 : i64, scratch_operands = 0 : i64, tpu.core_type = #tpu.core_type<tc>, window_params = [{transform_indices = @transform_0, window_bounds = array<i64: 1, 4, 16>}, {pipeline_mode = #tpu.pipeline_mode<synchronous>, transform_indices = @transform_1, window_bounds = array<i64: 4, 1>}, {pipeline_mode = #tpu.pipeline_mode<synchronous>, transform_indices = @transform_2, window_bounds = array<i64: 4, 1>}]} {
    %c0_i32 = arith.constant 0 : i32
    %0 = arith.cmpi eq, %arg0, %c0_i32 : i32
    %c0_i32_0 = arith.constant 0 : i32
    %1 = arith.cmpi eq, %arg1, %c0_i32_0 : i32
    %2 = arith.andi %0, %1 : i1
    %3 = arith.extui %2 : i1 to i32
    %c0_i32_1 = arith.constant 0 : i32
    %4 = arith.cmpi ne, %3, %c0_i32_1 : i32
    scf.if %4 {
      %cst_13 = arith.constant 0.000000e+00 : f32
      %18 = vector.broadcast %cst_13 : f32 to vector<4x1xf32>
      %c0_14 = arith.constant 0 : index
      %c0_15 = arith.constant 0 : index
      %19 = vector.load %arg3[%c0_14, %c0_15] : memref<4x1xf32, #tpu.memory_space<vmem>>, vector<4x1xf32>
      tpu.vector_store %arg3[%c0_14, %c0_15], %18 {strides = array<i32>} : memref<4x1xf32, #tpu.memory_space<vmem>>, vector<4x1xf32>,
      %cst_16 = arith.constant 0.000000e+00 : f32
      %20 = vector.broadcast %cst_16 : f32 to vector<4x1xf32>
      %c0_17 = arith.constant 0 : index
      %c0_18 = arith.constant 0 : index
      %21 = vector.load %arg4[%c0_17, %c0_18] : memref<4x1xf32, #tpu.memory_space<vmem>>, vector<4x1xf32>
      tpu.vector_store %arg4[%c0_17, %c0_18], %20 {strides = array<i32>} : memref<4x1xf32, #tpu.memory_space<vmem>>, vector<4x1xf32>,
    } else {
    }
    %c0 = arith.constant 0 : index
    %c0_2 = arith.constant 0 : index
    %c0_3 = arith.constant 0 : index
    %5 = vector.load %arg2[%c0, %c0_2, %c0_3] : memref<1x4x16xf32, #tpu.memory_space<vmem>>, vector<1x4x16xf32>
    %6 = vector.shape_cast %5 : vector<1x4x16xf32> to vector<4x16xf32>
    %c0_4 = arith.constant 0 : index
    %c0_5 = arith.constant 0 : index
    %7 = vector.load %arg3[%c0_4, %c0_5] : memref<4x1xf32, #tpu.memory_space<vmem>>, vector<4x1xf32>
    %cst = arith.constant dense<0.000000e+00> : vector<4xf32>
    %8 = vector.multi_reduction <add>, %6, %cst [1] : vector<4x16xf32> to vector<4xf32>
    %9 = vector.shape_cast %8 : vector<4xf32> to vector<4x1xf32>
    %10 = arith.addf %7, %9 : vector<4x1xf32>
    %c0_6 = arith.constant 0 : index
    %c0_7 = arith.constant 0 : index
    %11 = vector.load %arg3[%c0_6, %c0_7] : memref<4x1xf32, #tpu.memory_space<vmem>>, vector<4x1xf32>
    tpu.vector_store %arg3[%c0_6, %c0_7], %10 {strides = array<i32>} : memref<4x1xf32, #tpu.memory_space<vmem>>, vector<4x1xf32>,
    %c0_8 = arith.constant 0 : index
    %c0_9 = arith.constant 0 : index
    %12 = vector.load %arg4[%c0_8, %c0_9] : memref<4x1xf32, #tpu.memory_space<vmem>>, vector<4x1xf32>
    %13 = arith.mulf %6, %6 : vector<4x16xf32>
    %cst_10 = arith.constant dense<0.000000e+00> : vector<4xf32>
    %14 = vector.multi_reduction <add>, %13, %cst_10 [1] : vector<4x16xf32> to vector<4xf32>
    %15 = vector.shape_cast %14 : vector<4xf32> to vector<4x1xf32>
    %16 = arith.addf %12, %15 : vector<4x1xf32>
    %c0_11 = arith.constant 0 : index
    %c0_12 = arith.constant 0 : index
    %17 = vector.load %arg4[%c0_11, %c0_12] : memref<4x1xf32, #tpu.memory_space<vmem>>, vector<4x1xf32>
    tpu.vector_store %arg4[%c0_11, %c0_12], %16 {strides = array<i32>} : memref<4x1xf32, #tpu.memory_space<vmem>>, vector<4x1xf32>,
    return
  }
  func.func @transform_0(%arg0: i32, %arg1: i32) -> (i32, i32, i32) {
    %c0_i32 = arith.constant 0 : i32
    %c0_i32_0 = arith.constant 0 : i32
    return %arg0, %c0_i32, %arg1 : i32, i32, i32
  }
  func.func @transform_1(%arg0: i32, %arg1: i32) -> (i32, i32) {
    %c0_i32 = arith.constant 0 : i32
    %c0_i32_0 = arith.constant 0 : i32
    %c0_i32_1 = arith.constant 0 : i32
    return %c0_i32, %c0_i32_0 : i32, i32
  }
  func.func @transform_2(%arg0: i32, %arg1: i32) -> (i32, i32) {
    %c0_i32 = arith.constant 0 : i32
    %c0_i32_0 = arith.constant 0 : i32
    %c0_i32_1 = arith.constant 0 : i32
    return %c0_i32, %c0_i32_0 : i32, i32
  }
}

</mosaic_0001>

<llo_original>
// kernel: tpu_custom_call.1
$region0: #{tpu_custom_call.1}
  #allocation0 [shape = 'u32[]', space=smem, size = 0x4, offset = 0x4, fixed_abs, tag = 'smem constant byte address 0x4 - core index']
  #allocation1 [shape = 'u32[144,128]{1,0:T(1,128)}', space=vmem, size = 0x12000, scoped, tag = 'internal scratch']
  %s0 = inlined_call_operand.hbm [shape: f32[2,4,16], index: 0, kind: input, shape index: {}]
  %s1 = inlined_call_operand.vmem [shape: f32[4,1], index: 1, kind: output, shape index: {0}]
  %s2 = inlined_call_operand.vmem [shape: f32[4,1], index: 2, kind: output, shape index: {1}]
  %3 = xla_tuple %s1, %s2
  %s4 = sld [smem:[#allocation0]]
  $region53: #{tpu_custom_call.1} parent=0
    _
  %s6 = ssub.s32 1, %s4
  %s7 = scalar_select 0, %s6, %s4
  $region1: #{tpu_custom_call.1} parent=0
    #allocation2 [shape = 'u8[4096]{0}', space=vmem, size = 0x1000, scoped, tag = 'input window, operand 0']
    #allocation3 [shape = 's32[2]{0}', space=sflag, size = 0x8, scoped, tag = 'scoped memory for tpu_custom_call.1']
    %8 = vsyncpa [#allocation3], 0
    %s9 = scalar_lea.sflag [#allocation3], 1
    %10 = vsyncpa %s9, 0
    loop: start=0, step=1, limit=4
    $region2: #{tpu_custom_call.1} parent=1 // loop_pre_header
      _
    $region3: #{tpu_custom_call.1} parent=1 // loop_header
      %s12 = sphi 0, %s16
      %p13 = scmp.ge.s32.totalorder %s12, 4
      %s19 = sphi 0, %s31
      %s20 = sphi 0, %s27
      %s21 = sphi 0, %s19
      %s22 = sphi 0, %s20
      %s23 = sphi 0, %s21
      %s24 = sphi 0, %s22
      %s36 = sphi 0, %s38
      %s39 = sphi 0, %s36
      %s40 = sphi 0, %s39
      %s56 = sphi 0, %s40
      %s60 = sphi 0, %s60
      %s62 = sphi 0, %s60
      %s63 = sphi 0, %s62
      %s77 = sphi 0, %s63
      %s81 = sphi 0, %s81
      %s83 = sphi 0, %s81
      %s84 = sphi 0, %s83
      %s98 = sphi 0, %s84
    $region4: #{tpu_custom_call.1} parent=1 // loop_header_branch
      %15 = sbr.rel (%p13) target = $region8
    $region5: #{tpu_custom_call.1} parent=1 // loop_body
      %s17 = ssub.s32 %s12, 1
      %s18 = ssub.s32 %s12, 2
      %s25 = sadd.s32 1, %s20
      %p26 = scmp.ge.s32.totalorder %s25, 1
      %s27 = scalar_select %p26, 0, %s25
      %s28 = sadd.s32 1, %s19
      %s29 = scalar_select %p26, %s28, %s19
      %p30 = scmp.ge.s32.totalorder %s29, 2
      %s31 = scalar_select %p30, 0, %s29
      %s32 = ssub.s32 %s19, %s31
      %s33 = ssub.s32 %s20, %s27
      %s34 = sor.u32 %s32, %s33
      %p35 = scmp.eq.s32.totalorder %s34, 0
      %s37 = sadd.s32 %s36, 1
      %s38 = scalar_select %p35, %s36, %s37
      %p41 = pneg %p35
      %p42 = scmp.eq.s32.totalorder %s12, 1
      %p43 = por %p41, %p42
      %p44 = scmp.ne.s32.totalorder %s36, %s39
      %p45 = scmp.eq.s32.totalorder %s12, 0
      %p46 = por %p44, %p45
      %p47 = scmp.ne.s32.totalorder %s36, %s39
      %p48 = scmp.eq.s32.totalorder %s17, 1
      %p49 = por %p47, %p48
      %p50 = scmp.ne.s32.totalorder %s39, %s40
      %p51 = scmp.eq.s32.totalorder %s17, 0
      %p52 = por %p50, %p51
      %p53 = scmp.ne.s32.totalorder %s39, %s40
      %p54 = scmp.eq.s32.totalorder %s18, 1
      %p55 = por %p53, %p54
      %p57 = scmp.ne.s32.totalorder %s40, %s56
      %p58 = scmp.eq.s32.totalorder %s18, 0
      %p59 = por %p57, %p58
      %s61 = sadd.s32 %s60, 1
      %p64 = scmp.eq.s32.totalorder %s12, 1
      %p65 = scmp.ne.s32.totalorder %s60, %s62
      %p66 = scmp.eq.s32.totalorder %s12, 0
      %p67 = por %p65, %p66
      %p68 = scmp.ne.s32.totalorder %s60, %s62
      %p69 = scmp.eq.s32.totalorder %s17, 1
      %p70 = por %p68, %p69
      %p71 = scmp.ne.s32.totalorder %s62, %s63
      %p72 = scmp.eq.s32.totalorder %s17, 0
      %p73 = por %p71, %p72
      %p74 = scmp.ne.s32.totalorder %s62, %s63
      %p75 = scmp.eq.s32.totalorder %s18, 1
      %p76 = por %p74, %p75
      %p78 = scmp.ne.s32.totalorder %s63, %s77
      %p79 = scmp.eq.s32.totalorder %s18, 0
      %p80 = por %p78, %p79
      %s82 = sadd.s32 %s81, 1
      %p85 = scmp.eq.s32.totalorder %s12, 1
      %p86 = scmp.ne.s32.totalorder %s81, %s83
      %p87 = scmp.eq.s32.totalorder %s12, 0
      %p88 = por %p86, %p87
      %p89 = scmp.ne.s32.totalorder %s81, %s83
      %p90 = scmp.eq.s32.totalorder %s17, 1
      %p91 = por %p89, %p90
      %p92 = scmp.ne.s32.totalorder %s83, %s84
      %p93 = scmp.eq.s32.totalorder %s17, 0
      %p94 = por %p92, %p93
      %p95 = scmp.ne.s32.totalorder %s83, %s84
      %p96 = scmp.eq.s32.totalorder %s18, 1
      %p97 = por %p95, %p96
      %p99 = scmp.ne.s32.totalorder %s84, %s98
      %p100 = scmp.eq.s32.totalorder %s18, 0
      %p101 = por %p99, %p100
      %p102 = scmp.le.s32.totalorder 1, %s12
      %p103 = scmp.lt.s32.totalorder %s12, 3
      %p104 = pnand %p102, %p103
      %p105 = pneg %p104
      // Predicated region
      $region9: #{tpu_custom_call.1} parent=5 // pred_check
        _
      $region10: #{tpu_custom_call.1} parent=5 // pred_check_branch
        %107 = sbr.rel (%p104) target = $region12
      $region11: #{tpu_custom_call.1} parent=5 // pred_region
        %s108 = ssub.s32 %s12, 1
      $region12: #{tpu_custom_call.1} parent=5 // pred_fallthru
        _
      %p109 = scmp.lt.s32.totalorder %s12, 2
      // Predicated region
      $region13: #{tpu_custom_call.1} parent=5 // pred_check
        %p110 = pneg %p109
      $region14: #{tpu_custom_call.1} parent=5 // pred_check_branch
        %112 = sbr.rel (%p110) target = $region16
      $region15: #{tpu_custom_call.1} parent=5 // pred_region
        // Predicated region
        $region17: #{tpu_custom_call.1} parent=15 // pred_check
          %p113 = pneg %p46
        $region18: #{tpu_custom_call.1} parent=15 // pred_check_branch
          %115 = sbr.rel (%p113) target = $region20
        $region19: #{tpu_custom_call.1} parent=15 // pred_region
          %s116 = sand.u32 %s36, 1
          %s117 = scalar_lea.sflag [#allocation3], %s116
          %s118 = sand.u32 %s36, 1
          %s119 = smul.addr %s118, 4
          %s120 = scalar_lea.vmem [#allocation2], %s119
          %s122 = ssub.s32 64, 64
          %123 = vsyncadd %s117, %s122
          %s124 = sadd.s32 %s20, %s19
          %s125 = smul.addr %s124, 64
          %s126 = scalar_lea.hbm %s0, %s125
          %s128 = sshll.u32 %s120, 4
          %s129 = int_to_ptr.vmem [resolvable:$true] %s128
          %131 = dma.hbm_to_vmem [thread:$0]  %s126, 64, %s129, %s117
        $region20: #{tpu_custom_call.1} parent=15 // pred_fallthru
          _
      $region16: #{tpu_custom_call.1} parent=5 // pred_fallthru
        _
      %p132 = scmp.le.s32.totalorder 1, %s12
      %p133 = scmp.lt.s32.totalorder %s12, 3
      %p134 = pnand %p132, %p133
      %p135 = pneg %p134
      // Predicated region
      $region21: #{tpu_custom_call.1} parent=5 // pred_check
        _
      $region22: #{tpu_custom_call.1} parent=5 // pred_check_branch
        %137 = sbr.rel (%p134) target = $region24
      $region23: #{tpu_custom_call.1} parent=5 // pred_region
        %s138 = ssub.s32 %s12, 1
        %s139 = sand.u32 %s39, 1
        %s140 = scalar_lea.sflag [#allocation3], %s139
        %s141 = sand.u32 %s39, 1
        %s142 = smul.addr %s141, 4
        %s143 = scalar_lea.vmem [#allocation2], %s142
        // Predicated region
        $region25: #{tpu_custom_call.1} parent=23 // pred_check
          %p144 = pneg %p52
        $region26: #{tpu_custom_call.1} parent=23 // pred_check_branch
          %146 = sbr.rel (%p144) target = $region28
        $region27: #{tpu_custom_call.1} parent=23 // pred_region
          %147 = dma.done %s140, 64
        $region28: #{tpu_custom_call.1} parent=23 // pred_fallthru
          _
        %s148 = sand.u32 %s39, 1
        %s149 = scalar_lea.sflag [#allocation3], %s148
        %s150 = sand.u32 %s39, 1
        %s151 = smul.addr %s150, 4
        %s152 = scalar_lea.vmem [#allocation2], %s151
        %p153 = pneg %p52
        %p154 = pneg %p49
        %p155 = pneg %p73
        %p156 = pneg %p70
        %p157 = pneg %p94
        %p158 = pneg %p91
        %p159 = scmp.eq.s32.totalorder %s21, 0
        %p160 = scmp.eq.s32.totalorder %s22, 0
        %p161 = pnand %p159, %p160
        %p162 = pneg %p161
        // Predicated region
        $region29: #{tpu_custom_call.1} parent=23 // pred_check
          _
        $region30: #{tpu_custom_call.1} parent=23 // pred_check_branch
          %164 = sbr.rel (%p161) target = $region32
        $region31: #{tpu_custom_call.1} parent=23 // pred_region
          %vm165 = vcmask 3072
          %166 = vst.msk [vmem:[%s1] sm:$0xf] %vm165, 0.0
          %167 = vst.msk [vmem:[%s2] sm:$0xf] %vm165, 0.0
        $region32: #{tpu_custom_call.1} parent=23 // pred_fallthru
          _
        %v168 = vld [vmem:[%s143] sm:$0xf]
        %v169 = vld [vmem:[%s1] sm:$0xf]
        %vm170 = vcmask 125952
        %v171 = vsel %vm170, %v168, 0.0
        %172 = vadd.xlane.f32.xlu0 %v171
        %v173 = vpop.xlane.xlu0 %172
        %v174 = vadd.f32 %v169, %v173
        %vm175 = vcmask 3072
        %176 = vst.msk [vmem:[%s1] sm:$0xf] %vm175, %v174
        %v177 = vld [vmem:[%s2] sm:$0xf]
        %v178 = vmul.f32 %v168, %v168
        %v179 = vsel %vm170, %v178, 0.0
        %180 = vadd.xlane.f32.xlu0 %v179
        %v181 = vpop.xlane.xlu0 %180
        %v182 = vadd.f32 %v177, %v181
        %183 = vst.msk [vmem:[%s2] sm:$0xf] %vm175, %v182
        // Predicated region
        $region33: #{tpu_custom_call.1} parent=23 // pred_check
          %p184 = pneg %p70
        $region34: #{tpu_custom_call.1} parent=23 // pred_check_branch
          %186 = sbr.rel (%p184) target = $region36
        $region35: #{tpu_custom_call.1} parent=23 // pred_region
          _
        $region36: #{tpu_custom_call.1} parent=23 // pred_fallthru
          _
        // Predicated region
        $region37: #{tpu_custom_call.1} parent=23 // pred_check
          %p187 = pneg %p91
        $region38: #{tpu_custom_call.1} parent=23 // pred_check_branch
          %189 = sbr.rel (%p187) target = $region40
        $region39: #{tpu_custom_call.1} parent=23 // pred_region
          _
        $region40: #{tpu_custom_call.1} parent=23 // pred_fallthru
          _
        // Predicated region
        $region41: #{tpu_custom_call.1} parent=23 // pred_check
          %p190 = pneg %p70
        $region42: #{tpu_custom_call.1} parent=23 // pred_check_branch
          %192 = sbr.rel (%p190) target = $region44
        $region43: #{tpu_custom_call.1} parent=23 // pred_region
          _
        $region44: #{tpu_custom_call.1} parent=23 // pred_fallthru
          _
        // Predicated region
        $region45: #{tpu_custom_call.1} parent=23 // pred_check
          %p193 = pneg %p91
        $region46: #{tpu_custom_call.1} parent=23 // pred_check_branch
          %195 = sbr.rel (%p193) target = $region48
        $region47: #{tpu_custom_call.1} parent=23 // pred_region
          _
        $region48: #{tpu_custom_call.1} parent=23 // pred_fallthru
          _
      $region24: #{tpu_custom_call.1} parent=5 // pred_fallthru
        _
      %p196 = scmp.le.s32.totalorder 2, %s12
      // Predicated region
      $region49: #{tpu_custom_call.1} parent=5 // pred_check
        %p197 = pneg %p196
      $region50: #{tpu_custom_call.1} parent=5 // pred_check_branch
        %199 = sbr.rel (%p197) target = $region52
      $region51: #{tpu_custom_call.1} parent=5 // pred_region
        %s200 = ssub.s32 %s12, 2
      $region52: #{tpu_custom_call.1} parent=5 // pred_fallthru
        _
    $region6: #{tpu_custom_call.1} parent=1 // loop_footer
      %s16 = sadd.s32 1, %s12
    $region7: #{tpu_custom_call.1} parent=1 // loop_footer_branch
      %11 = sbr.rel target = $region3
    $region8: #{tpu_custom_call.1} parent=1 // loop_exit
      _
    %201 = vsyncpa [#allocation3], 1
    %s202 = scalar_lea.sflag [#allocation3], 1
    %203 = vsyncpa %s202, 1

</llo_original>
